<compile_context>
chip_gen: v7x
topology: tpu7x:2x2x1
jax: 0.10.0
libtpu: 0.0.40
codegen_flags: <defaults>
</compile_context>

<pallas_src>
import math

import jax
import jax.numpy as jnp
from jax.experimental import pallas as pl
from jax.experimental.pallas import tpu as pltpu

G = 10            # groups == out_channels
C_IN = 30         # in_channels
C_PER_G = C_IN // G   # 3


def _groupconv_kernel(x_ref, w_ref, o_ref):
    # x_ref: (N_TILE, C=30, S_TILE)   folded batch tile of spatial columns
    # w_ref: (G=10, C=30)             block-diagonal grouped-conv weight (resident)
    # o_ref: (N_TILE, G=10, S_TILE)
    w = w_ref[...]
    for n in range(x_ref.shape[0]):           # static unroll over the batch fold
        o_ref[n, :, :] = jnp.dot(
            w, x_ref[n, :, :], preferred_element_type=jnp.float32
        ).astype(o_ref.dtype)


def groupconv_pallas(x_nchw, weight):
    """x_nchw: (N, 30, H, W); weight: (10, 3, 1, 1) in PyTorch OIHW layout."""
    N, C, H, W = x_nchw.shape
    assert C == C_IN, C
    S = H * W
    dtype = x_nchw.dtype
    itemsize = jnp.dtype(dtype).itemsize

    # ---- spatial tiling -----------------------------------------------------
    # Pure HBM-BW kernel: make per-step DMA time dominate the ~0.35us fixed cost.
    cap_lanes = 32768 if itemsize <= 2 else 16384      # multiple of 128
    if S <= cap_lanes:
        # Whole spatial extent as one block (block dim == full array dim):
        # no wrapper pad, no output slice, <=127 lanes of internal padding.
        s_tile = S
        n_s_tiles = 1
    else:
        # Lane-dense 128-multiple tiles; ragged last tile is bounded by Pallas
        # (out-of-range output lanes dropped), so still no wrapper pad/slice.
        s_tile = cap_lanes
        n_s_tiles = pl.cdiv(S, s_tile)

    # ---- batch folding (amortize per-step overhead for small images) --------
    target_step_bytes = 2 * 1024 * 1024
    per_elem_bytes = (C + G) * s_tile * itemsize
    n_tile = 1
    for cand in range(1, N + 1):
        if N % cand:
            continue
        steps = (N // cand) * n_s_tiles
        # Keep >= 2 grid steps whenever there is >= 2 steps of work (v7x megacore).
        if cand * per_elem_bytes <= target_step_bytes and (
            steps >= 2 or N * n_s_tiles < 2
        ):
            n_tile = cand
    n_b_tiles = N // n_tile

    # ---- dense block-diagonal weight (G, C): row g holds w[g,:] at cols 3g:3g+3
    w_g = weight.reshape(G, C_PER_G).astype(dtype)
    w_bd = (jnp.eye(G, dtype=dtype)[:, :, None] * w_g[None, :, :]).reshape(G, C)

    x_r = x_nchw.reshape(N, C, S)

    # ---- VMEM budget from the actual (padded, double-buffered) footprint ----
    def _rup(v, m):
        return (v + m - 1) // m * m

    sub = max(8, 32 // itemsize)               # sublane packing multiple
    in_blk = n_tile * _rup(C, sub) * _rup(s_tile, 128) * itemsize
    out_blk = n_tile * _rup(G, sub) * _rup(s_tile, 128) * itemsize
    w_blk = _rup(G, sub) * _rup(C, 128) * itemsize
    vmem_need = 2 * (in_blk + out_blk + w_blk)
    vmem_limit = int(min(48 * 1024 * 1024, max(16 * 1024 * 1024, 3 * vmem_need)))

    cost = pl.CostEstimate(
        flops=2 * N * G * C_PER_G * S,
        transcendentals=0,
        bytes_accessed=itemsize * (N * C * S + N * G * S) + itemsize * G * C,
    )

    out = pl.pallas_call(
        _groupconv_kernel,
        out_shape=jax.ShapeDtypeStruct((N, G, S), dtype),
        grid_spec=pltpu.PrefetchScalarGridSpec(
            num_scalar_prefetch=0,
            grid=(n_b_tiles, n_s_tiles),
            in_specs=[
                pl.BlockSpec((n_tile, C, s_tile), lambda b, s: (b, 0, s)),
                pl.BlockSpec((G, C), lambda b, s: (0, 0)),   # tiny, fully resident
            ],
            out_specs=pl.BlockSpec((n_tile, G, s_tile), lambda b, s: (b, 0, s)),
        ),
        compiler_params=pltpu.CompilerParams(
            dimension_semantics=("parallel", "parallel"),
            vmem_limit_bytes=vmem_limit,
        ),
        cost_estimate=cost,
    )(x_r, w_bd)

    return out.reshape(N, G, H, W)


def groupconv_reference(x_nchw, weight):
    """Pure-JAX reference: grouped 1x1 conv (feature_group_count=10)."""
    return jax.lax.conv_general_dilated(
        x_nchw, weight,
        window_strides=(1, 1),
        padding="VALID",
        dimension_numbers=("NCHW", "OIHW", "NCHW"),
        feature_group_count=G,
    )


if __name__ == "__main__":
    key = jax.random.PRNGKey(0)
    k_x, k_w = jax.random.split(key)

    # Shapes consistent with the module: Conv2d(30, 10, 1, groups=10, bias=False).
    N, C, H, W = 2, 30, 4, 5
    x = jax.random.uniform(k_x, (N, C, H, W), dtype=jnp.float32)

    # Deterministic weight init, PyTorch Conv2d weight shape (10, 3, 1, 1).
    bound = 1.0 / math.sqrt(C_PER_G)
    weight = jax.random.uniform(k_w, (G, C_PER_G, 1, 1), dtype=jnp.float32,
                                minval=-bound, maxval=bound)

    out = jax.block_until_ready(groupconv_pallas(x, weight))
    ref = groupconv_reference(x, weight)

    assert out.shape == (N, G, H, W), out.shape
    assert jnp.allclose(out, ref, atol=1e-5, rtol=1e-5), "mismatch vs lax.conv reference"

    print("KERNEL_OK")
</pallas_src>

<mosaic_0001>
module attributes {stable_mosaic.version = 11 : i64} {
  func.func @_groupconv_kernel(%arg0: i32, %arg1: i32, %arg2: memref<1x30x20xf32, #tpu.memory_space<vmem>>, %arg3: memref<10x30xf32, #tpu.memory_space<vmem>>, %arg4: memref<1x10x20xf32, #tpu.memory_space<vmem>>) attributes {dimension_semantics = [#tpu.dimension_semantics<parallel>, #tpu.dimension_semantics<parallel>], iteration_bounds = array<i64: 2, 1>, scalar_prefetch = 0 : i64, scratch_operands = 0 : i64, tpu.core_type = #tpu.core_type<tc>, window_params = [{transform_indices = @transform_0, window_bounds = array<i64: 1, 30, 20>}, {pipeline_mode = #tpu.pipeline_mode<synchronous>, transform_indices = @transform_1, window_bounds = array<i64: 10, 30>}, {transform_indices = @transform_2, window_bounds = array<i64: 1, 10, 20>}]} {
    %c0 = arith.constant 0 : index
    %c0_0 = arith.constant 0 : index
    %0 = vector.load %arg3[%c0, %c0_0] : memref<10x30xf32, #tpu.memory_space<vmem>>, vector<10x30xf32>
    %c0_1 = arith.constant 0 : index
    %c0_2 = arith.constant 0 : index
    %c0_3 = arith.constant 0 : index
    %1 = vector.load %arg2[%c0_1, %c0_2, %c0_3] : memref<1x30x20xf32, #tpu.memory_space<vmem>>, vector<1x30x20xf32>
    %2 = vector.shape_cast %1 : vector<1x30x20xf32> to vector<30x20xf32>
    %cst = arith.constant dense<0.000000e+00> : vector<10x20xf32>
    %3 = tpu.matmul %0, %2, %cst {dimension_numbers = #tpu.dot_dimension_numbers<[1], [0], [0], [1], [0, 0, 1, 1], [], []>} : vector<10x30xf32>, vector<30x20xf32>, vector<10x20xf32> -> vector<10x20xf32>
    %c0_4 = arith.constant 0 : index
    %c0_5 = arith.constant 0 : index
    %c0_6 = arith.constant 0 : index
    %4 = vector.load %arg4[%c0_4, %c0_5, %c0_6] : memref<1x10x20xf32, #tpu.memory_space<vmem>>, vector<1x10x20xf32>
    %5 = vector.shape_cast %4 : vector<1x10x20xf32> to vector<10x20xf32>
    %6 = vector.shape_cast %3 : vector<10x20xf32> to vector<1x10x20xf32>
    tpu.vector_store %arg4[%c0_4, %c0_5, %c0_6], %6 {strides = array<i32>} : memref<1x10x20xf32, #tpu.memory_space<vmem>>, vector<1x10x20xf32>,
    return
  }
  func.func @transform_0(%arg0: i32, %arg1: i32) -> (i32, i32, i32) {
    %c0_i32 = arith.constant 0 : i32
    %c0_i32_0 = arith.constant 0 : i32
    return %arg0, %c0_i32, %arg1 : i32, i32, i32
  }
  func.func @transform_1(%arg0: i32, %arg1: i32) -> (i32, i32) {
    %c0_i32 = arith.constant 0 : i32
    %c0_i32_0 = arith.constant 0 : i32
    %c0_i32_1 = arith.constant 0 : i32
    return %c0_i32, %c0_i32_0 : i32, i32
  }
  func.func @transform_2(%arg0: i32, %arg1: i32) -> (i32, i32, i32) {
    %c0_i32 = arith.constant 0 : i32
    %c0_i32_0 = arith.constant 0 : i32
    return %arg0, %c0_i32, %arg1 : i32, i32, i32
  }
}

</mosaic_0001>

<llo_original>
// kernel: tpu_custom_call.1
$region0: #{tpu_custom_call.1}
  #allocation0 [shape = 'u32[]', space=smem, size = 0x4, offset = 0x4, fixed_abs, tag = 'smem constant byte address 0x4 - core index']
  #allocation1 [shape = 'u32[144,128]{1,0:T(1,128)}', space=vmem, size = 0x12000, scoped, tag = 'internal scratch']
  %s0 = inlined_call_operand.vmem [shape: f32[2,30,20], index: 0, kind: input, shape index: {}]
  %s1 = inlined_call_operand.vmem [shape: f32[10,30], index: 1, kind: input, shape index: {}]
  %s2 = inlined_call_operand.vmem [shape: f32[2,10,20], index: 2, kind: output, shape index: {}]
  %s3 = sld [smem:[#allocation0]]
  $region41: #{tpu_custom_call.1} parent=0
    _
  %s5 = ssub.s32 1, %s3
  %s6 = scalar_select 0, %s5, %s3
  loop: start=0, step=1, limit=4
  $region2: #{tpu_custom_call.1} parent=0 // loop_pre_header
    _
  $region3: #{tpu_custom_call.1} parent=0 // loop_header
    %s8 = sphi 0, %s12
    %p9 = scmp.ge.s32.totalorder %s8, 4
    %s15 = sphi 0, %s27
    %s16 = sphi 0, %s23
    %s17 = sphi 0, %s15
    %s18 = sphi 0, %s16
    %s19 = sphi 0, %s17
    %s20 = sphi 0, %s18
    %s32 = sphi 0, %s34
    %s35 = sphi 0, %s32
    %s36 = sphi 0, %s35
    %s52 = sphi 0, %s36
    %s56 = sphi 0, %s56
    %s58 = sphi 0, %s56
    %s59 = sphi 0, %s58
    %s73 = sphi 0, %s59
    %s81 = sphi 0, %s83
    %s84 = sphi 0, %s81
    %s85 = sphi 0, %s84
    %s101 = sphi 0, %s85
  $region4: #{tpu_custom_call.1} parent=0 // loop_header_branch
    %11 = sbr.rel (%p9) target = $region8
  $region5: #{tpu_custom_call.1} parent=0 // loop_body
    %s13 = ssub.s32 %s8, 1
    %s14 = ssub.s32 %s8, 2
    %s21 = sadd.s32 1, %s16
    %p22 = scmp.ge.s32.totalorder %s21, 1
    %s23 = scalar_select %p22, 0, %s21
    %s24 = sadd.s32 1, %s15
    %s25 = scalar_select %p22, %s24, %s15
    %p26 = scmp.ge.s32.totalorder %s25, 2
    %s27 = scalar_select %p26, 0, %s25
    %s28 = ssub.s32 %s15, %s27
    %s29 = ssub.s32 %s16, %s23
    %s30 = sor.u32 %s28, %s29
    %p31 = scmp.eq.s32.totalorder %s30, 0
    %s33 = sadd.s32 %s32, 1
    %s34 = scalar_select %p31, %s32, %s33
    %p37 = pneg %p31
    %p38 = scmp.eq.s32.totalorder %s8, 1
    %p39 = por %p37, %p38
    %p40 = scmp.ne.s32.totalorder %s32, %s35
    %p41 = scmp.eq.s32.totalorder %s8, 0
    %p42 = por %p40, %p41
    %p43 = scmp.ne.s32.totalorder %s32, %s35
    %p44 = scmp.eq.s32.totalorder %s13, 1
    %p45 = por %p43, %p44
    %p46 = scmp.ne.s32.totalorder %s35, %s36
    %p47 = scmp.eq.s32.totalorder %s13, 0
    %p48 = por %p46, %p47
    %p49 = scmp.ne.s32.totalorder %s35, %s36
    %p50 = scmp.eq.s32.totalorder %s14, 1
    %p51 = por %p49, %p50
    %p53 = scmp.ne.s32.totalorder %s36, %s52
    %p54 = scmp.eq.s32.totalorder %s14, 0
    %p55 = por %p53, %p54
    %s57 = sadd.s32 %s56, 1
    %p60 = scmp.eq.s32.totalorder %s8, 1
    %p61 = scmp.ne.s32.totalorder %s56, %s58
    %p62 = scmp.eq.s32.totalorder %s8, 0
    %p63 = por %p61, %p62
    %p64 = scmp.ne.s32.totalorder %s56, %s58
    %p65 = scmp.eq.s32.totalorder %s13, 1
    %p66 = por %p64, %p65
    %p67 = scmp.ne.s32.totalorder %s58, %s59
    %p68 = scmp.eq.s32.totalorder %s13, 0
    %p69 = por %p67, %p68
    %p70 = scmp.ne.s32.totalorder %s58, %s59
    %p71 = scmp.eq.s32.totalorder %s14, 1
    %p72 = por %p70, %p71
    %p74 = scmp.ne.s32.totalorder %s59, %s73
    %p75 = scmp.eq.s32.totalorder %s14, 0
    %p76 = por %p74, %p75
    %s77 = ssub.s32 %s15, %s27
    %s78 = ssub.s32 %s16, %s23
    %s79 = sor.u32 %s77, %s78
    %p80 = scmp.eq.s32.totalorder %s79, 0
    %s82 = sadd.s32 %s81, 1
    %s83 = scalar_select %p80, %s81, %s82
    %p86 = pneg %p80
    %p87 = scmp.eq.s32.totalorder %s8, 1
    %p88 = por %p86, %p87
    %p89 = scmp.ne.s32.totalorder %s81, %s84
    %p90 = scmp.eq.s32.totalorder %s8, 0
    %p91 = por %p89, %p90
    %p92 = scmp.ne.s32.totalorder %s81, %s84
    %p93 = scmp.eq.s32.totalorder %s13, 1
    %p94 = por %p92, %p93
    %p95 = scmp.ne.s32.totalorder %s84, %s85
    %p96 = scmp.eq.s32.totalorder %s13, 0
    %p97 = por %p95, %p96
    %p98 = scmp.ne.s32.totalorder %s84, %s85
    %p99 = scmp.eq.s32.totalorder %s14, 1
    %p100 = por %p98, %p99
    %p102 = scmp.ne.s32.totalorder %s85, %s101
    %p103 = scmp.eq.s32.totalorder %s14, 0
    %p104 = por %p102, %p103
    %p105 = scmp.le.s32.totalorder 1, %s8
    %p106 = scmp.lt.s32.totalorder %s8, 3
    %p107 = pnand %p105, %p106
    %p108 = pneg %p107
    // Predicated region
    $region9: #{tpu_custom_call.1} parent=5 // pred_check
      _
    $region10: #{tpu_custom_call.1} parent=5 // pred_check_branch
      %110 = sbr.rel (%p107) target = $region12
    $region11: #{tpu_custom_call.1} parent=5 // pred_region
      %s111 = ssub.s32 %s8, 1
      // Predicated region
      $region13: #{tpu_custom_call.1} parent=11 // pred_check
        %p112 = pneg %p69
      $region14: #{tpu_custom_call.1} parent=11 // pred_check_branch
        %114 = sbr.rel (%p112) target = $region16
      $region15: #{tpu_custom_call.1} parent=11 // pred_region
        _
      $region16: #{tpu_custom_call.1} parent=11 // pred_fallthru
        _
    $region12: #{tpu_custom_call.1} parent=5 // pred_fallthru
      _
    %p115 = scmp.lt.s32.totalorder %s8, 2
    // Predicated region
    $region17: #{tpu_custom_call.1} parent=5 // pred_check
      %p116 = pneg %p115
    $region18: #{tpu_custom_call.1} parent=5 // pred_check_branch
      %118 = sbr.rel (%p116) target = $region20
    $region19: #{tpu_custom_call.1} parent=5 // pred_region
      // Predicated region
      $region21: #{tpu_custom_call.1} parent=19 // pred_check
        %p119 = pneg %p42
      $region22: #{tpu_custom_call.1} parent=19 // pred_check_branch
        %121 = sbr.rel (%p119) target = $region24
      $region23: #{tpu_custom_call.1} parent=19 // pred_region
        %p122 = scmp.lt.s32.totalorder %s15, 1
        %s123 = scalar_select %p122, %s15, 1
        %p124 = scmp.lt.s32.totalorder %s16, 0
        %s125 = scalar_select %p124, %s16, 0
        %s126 = smul.addr %s123, 4
        %s127 = sadd.s32 %s125, %s126
        %s128 = smul.addr %s127, 8
        %s129 = scalar_lea.vmem %s0, %s128
      $region24: #{tpu_custom_call.1} parent=19 // pred_fallthru
        _
    $region20: #{tpu_custom_call.1} parent=5 // pred_fallthru
      _
    %p130 = scmp.le.s32.totalorder 1, %s8
    %p131 = scmp.lt.s32.totalorder %s8, 3
    %p132 = pnand %p130, %p131
    %p133 = pneg %p132
    // Predicated region
    $region25: #{tpu_custom_call.1} parent=5 // pred_check
      _
    $region26: #{tpu_custom_call.1} parent=5 // pred_check_branch
      %135 = sbr.rel (%p132) target = $region28
    $region27: #{tpu_custom_call.1} parent=5 // pred_region
      %s136 = ssub.s32 %s8, 1
      %p137 = scmp.lt.s32.totalorder %s17, 1
      %s138 = scalar_select %p137, %s17, 1
      %p139 = scmp.lt.s32.totalorder %s18, 0
      %s140 = scalar_select %p139, %s18, 0
      %s141 = smul.addr %s138, 4
      %s142 = sadd.s32 %s140, %s141
      %s143 = smul.addr %s142, 8
      %s144 = scalar_lea.vmem %s0, %s143
      %p145 = pneg %p48
      %p146 = pneg %p45
      %p147 = pneg %p69
      %p148 = pneg %p66
      %p149 = pneg %p97
      %p150 = pneg %p94
      %p151 = scmp.lt.s32.totalorder %s17, 1
      %s152 = scalar_select %p151, %s17, 1
      %p153 = scmp.lt.s32.totalorder %s18, 0
      %s154 = scalar_select %p153, %s18, 0
      %s155 = smul.addr %s152, 2
      %s156 = sadd.s32 %s154, %s155
      %s157 = smul.addr %s156, 8
      %s158 = scalar_lea.vmem %s2, %s157
      %p159 = scmp.lt.s32.totalorder %s17, 1
      %s160 = scalar_select %p159, %s17, 1
      %p161 = scmp.lt.s32.totalorder %s18, 0
      %s162 = scalar_select %p161, %s18, 0
      %s163 = smul.addr %s160, 4
      %s164 = sadd.s32 %s162, %s163
      %s165 = smul.addr %s164, 8
      %s166 = scalar_lea.vmem %s0, %s165
      %p167 = scmp.lt.s32.totalorder %s17, 1
      %s168 = scalar_select %p167, %s17, 1
      %p169 = scmp.lt.s32.totalorder %s18, 0
      %s170 = scalar_select %p169, %s18, 0
      %s171 = smul.addr %s168, 2
      %s172 = sadd.s32 %s170, %s171
      %s173 = smul.addr %s172, 8
      %s174 = scalar_lea.vmem %s2, %s173
      %v175 = vld [vmem:[%s1] sm:$0xff]
      %v176 = vld [vmem:[%s1 + $0x8] sm:$0x3]
      %v177 = vld [vmem:[%s166] sm:$0xff]
      %v178 = vld [vmem:[%s166 + $0x8] sm:$0xff]
      %v179 = vld [vmem:[%s166 + $0x10] sm:$0xff]
      %v180 = vld [vmem:[%s166 + $0x18] sm:$0x3f]
      %vm181 = vcmask 244736
      %v183 = vsel %vm181, %v175, 0
      %v186 = vsel %vm181, %v176, 0
      %vm188 = vcmask 1045504
      %v190 = vsel %vm188, %v180, 0
      %192 = vmatprep.subr.mxu0 0.0
      %193 = vmatpush1.msra.mxu0 %v177
      %194 = vmatprep.subr.mxu0 0.0
      %195 = vmatpush1.msra.mxu0 %v178
      %196 = vmatprep.subr.mxu0 0.0
      %197 = vmatpush1.msra.mxu0 %v179
      %198 = vmatprep.subr.mxu0 0.0
      %199 = vmatpush1.msra.mxu0 %v190
      %200 = vmatprep.subr.mxu0 0.0
      %201 = vmatpush1.msra.mxu0 0.0
      %202 = vmatprep.subr.mxu0 0.0
      %203 = vmatpush1.msra.mxu0 0.0
      %204 = vmatprep.subr.mxu0 0.0
      %205 = vmatpush1.msra.mxu0 0.0
      %206 = vmatprep.subr.mxu0 0.0
      %207 = vmatpush1.msra.mxu0 0.0
      %208 = vmatprep.subr.mxu0 0.0
      %209 = vmatpush1.msra.mxu0 0.0
      %210 = vmatprep.subr.mxu0 0.0
      %211 = vmatpush1.msra.mxu0 0.0
      %212 = vmatprep.subr.mxu0 0.0
      %213 = vmatpush1.msra.mxu0 0.0
      %214 = vmatprep.subr.mxu0 0.0
      %215 = vmatpush1.msra.mxu0 0.0
      %216 = vmatprep.subr.mxu0 0.0
      %217 = vmatpush1.msra.mxu0 0.0
      %218 = vmatprep.subr.mxu0 0.0
      %219 = vmatpush1.msra.mxu0 0.0
      %220 = vmatprep.subr.mxu0 0.0
      %221 = vmatpush1.msra.mxu0 0.0
      %222 = vmatprep.subr.mxu0 0.0
      %223 = vmatpush1.msra.mxu0 0.0
      %224 = vmatprep.subr.mxu0 0.0
      %225 = vmatpush1.msra.mxu0 0.0
      %226 = vmatprep.subr.mxu0 0.0
      %227 = vmatpush1.msra.mxu0 0.0
      %228 = vmatprep.subr.mxu0 0.0
      %229 = vmatpush1.msra.mxu0 0.0
      %230 = vmatprep.subr.mxu0 0.0
      %231 = vmatpush1.msra.mxu0 0.0
      %232 = vmatprep.subr.mxu0 0.0
      %233 = vmatpush1.msra.mxu0 0.0
      %234 = vmatprep.subr.mxu0 0.0
      %235 = vmatpush1.msra.mxu0 0.0
      %236 = vmatprep.subr.mxu0 0.0
      %237 = vmatpush1.msra.mxu0 0.0
      %238 = vmatprep.subr.mxu0 0.0
      %239 = vmatpush1.msra.mxu0 0.0
      %240 = vmatprep.subr.mxu0 0.0
      %241 = vmatpush1.msra.mxu0 0.0
      %242 = vmatprep.subr.mxu0 0.0
      %243 = vmatpush1.msra.mxu0 0.0
      %244 = vmatprep.subr.mxu0 0.0
      %245 = vmatpush1.msra.mxu0 0.0
      %246 = vmatprep.subr.mxu0 0.0
      %247 = vmatpush1.msra.mxu0 0.0
      %248 = vmatprep.subr.mxu0 0.0
      %249 = vmatpush1.msra.mxu0 0.0
      %250 = vmatprep.subr.mxu0 0.0
      %251 = vmatpush1.msra.mxu0 0.0
      %252 = vmatprep.subr.mxu0 0.0
      %253 = vmatpush1.msra.mxu0 0.0
      %254 = vmatprep.subr.mxu0 0.0
      %255 = vmatpush1.msra.mxu0 0.0
      %256 = vmatprep.mubr.f32.mxu0 0.0
      %257 = vmatmul.mubr.f32.gmra.mrb[0].mxu0 %v183
      %v258 = vpop.f32.mrb[0].mxu0
      %v259 = vadd.f32 0.0, %v258
      %v260 = vpop.f32.mrb[0].mxu0
      %261 = vmatprep.mubr.f32.mxu0 0.0
      %262 = vmatmul.mubr.f32.gmra.mrb[0].mxu0 %v186
      %v263 = vpop.f32.mrb[0].mxu0
      %v264 = vadd.f32 0.0, %v263
      %v265 = vpop.f32.mrb[0].mxu0
      %266 = vdwg.mxu0
      %vm267 = vcmask 162816
      %268 = vst.msk [vmem:[%s174] sm:$0xff] %vm267, %v259
      %vm269 = vcmask 156672
      %270 = vst.msk [vmem:[%s174 + $0x8] sm:$0x3] %vm269, %v264
      %p271 = scmp.lt.s32.totalorder %s17, 1
      %s272 = scalar_select %p271, %s17, 1
      %p273 = scmp.lt.s32.totalorder %s18, 0
      %s274 = scalar_select %p273, %s18, 0
      %s275 = smul.addr %s272, 2
      %s276 = sadd.s32 %s274, %s275
      %s277 = smul.addr %s276, 8
      %s278 = scalar_lea.vmem %s2, %s277
      // Predicated region
      $region29: #{tpu_custom_call.1} parent=27 // pred_check
        %p279 = pneg %p94
      $region30: #{tpu_custom_call.1} parent=27 // pred_check_branch
        %281 = sbr.rel (%p279) target = $region32
      $region31: #{tpu_custom_call.1} parent=27 // pred_region
        _
      $region32: #{tpu_custom_call.1} parent=27 // pred_fallthru
        _
    $region28: #{tpu_custom_call.1} parent=5 // pred_fallthru
      _
    %p282 = scmp.le.s32.totalorder 2, %s8
    // Predicated region
    $region33: #{tpu_custom_call.1} parent=5 // pred_check
      %p283 = pneg %p282
    $region34: #{tpu_custom_call.1} parent=5 // pred_check_branch
      %285 = sbr.rel (%p283) target = $region36
    $region35: #{tpu_custom_call.1} parent=5 // pred_region
      %s286 = ssub.s32 %s8, 2
      // Predicated region
      $region37: #{tpu_custom_call.1} parent=35 // pred_check
        %p287 = pneg %p100
      $region38: #{tpu_custom_call.1} parent=35 // pred_check_branch
        %289 = sbr.rel (%p287) target = $region40
      $region39: #{tpu_custom_call.1} parent=35 // pred_region
        %p290 = scmp.lt.s32.totalorder %s19, 1
        %s291 = scalar_select %p290, %s19, 1
        %p292 = scmp.lt.s32.totalorder %s20, 0
        %s293 = scalar_select %p292, %s20, 0
        %s294 = smul.addr %s291, 2
        %s295 = sadd.s32 %s293, %s294
        %s296 = smul.addr %s295, 8
        %s297 = scalar_lea.vmem %s2, %s296
      $region40: #{tpu_custom_call.1} parent=35 // pred_fallthru
        _
    $region36: #{tpu_custom_call.1} parent=5 // pred_fallthru
      _
  $region6: #{tpu_custom_call.1} parent=0 // loop_footer
    %s12 = sadd.s32 1, %s8
  $region7: #{tpu_custom_call.1} parent=0 // loop_footer_branch
    %7 = sbr.rel target = $region3
  $region8: #{tpu_custom_call.1} parent=0 // loop_exit
    _

</llo_original>
